<compile_context>
chip_gen: v6e
topology: v6e:2x2x1
jax: 0.10.0
libtpu: 0.0.40
codegen_flags: <defaults>
</compile_context>

<pallas_src>
import jax
import jax.numpy as jnp
from jax import lax
from jax.experimental import pallas as pl
from jax.experimental.pallas import tpu as pltpu

_NCORES = 2                    # leading "parallel" stats axis (v7x megacore)
_MIB = 1024 * 1024


def _round_up(x, m):
    return (x + m - 1) // m * m


# ---- Pass 1: conv matmul (MXU, f32 acc) -> per-channel sum / sumsq only -----
def _conv_stats_kernel(x_ref, w_ref, sum_ref, sq_ref):
    j = pl.program_id(1)                       # sequential ("arbitrary") M axis

    acc = jnp.dot(x_ref[...], w_ref[...], preferred_element_type=jnp.float32)

    @pl.when(j == 0)
    def _():
        sum_ref[...] = jnp.zeros_like(sum_ref)
        sq_ref[...] = jnp.zeros_like(sq_ref)

    tm, cp = acc.shape
    part = acc.reshape(tm // 8, 8, cp)         # sublane-partitioned partials
    sum_ref[...] += part.sum(axis=0)
    sq_ref[...] += (part * part).sum(axis=0)


# ---- Pass 2: recompute conv, fuse relu(conv*scale + shift), single write ----
def _conv_bn_relu_kernel(x_ref, w_ref, scale_ref, shift_ref, o_ref):
    acc = jnp.dot(x_ref[...], w_ref[...], preferred_element_type=jnp.float32)
    y = acc * scale_ref[...] + shift_ref[...]
    o_ref[...] = jnp.maximum(y, 0.0).astype(o_ref.dtype)


def basic_conv(x, weight, gamma, beta, *, stride=1, padding=1, eps=1e-5,
               tm=1024, matmul_dtype=jnp.bfloat16):
    """x: (N, Cin, H, W);  weight: (Cout, Cin, KH, KW);  gamma/beta: (Cout,)."""
    # TODO(synk): dilation != 1 / groups != 1 not implemented (module defaults).
    n, cin, h, w = x.shape
    cout, _, kh, kw = weight.shape
    oh = (h + 2 * padding - kh) // stride + 1
    ow = (w + 2 * padding - kw) // stride + 1

    m_real = n * oh * ow
    k_dim = kh * kw * cin                      # K-last ordering: (kh, kw, cin)
    cout_pad = _round_up(cout, 128)            # lane-dense output stores
    in_bytes = jnp.dtype(matmul_dtype).itemsize

    # ---- per-generation VMEM budget (v5e/v6e: 128 MiB, v7x: 64 MiB) ---------
    try:
        vmem_cap = int(pltpu.get_tpu_info().vmem_capacity_bytes)
    except Exception:
        vmem_cap = 64 * _MIB                   # conservative fallback
    tile_budget = int(vmem_cap * 0.55)
    vmem_limit = int(vmem_cap * 0.75)

    # ---- tile sizing: big tiles, clamped by the per-chip VMEM budget --------
    def _footprint(t):
        return (2 * t * k_dim * in_bytes           # x tile (double-buffered)
                + 2 * k_dim * cout_pad * in_bytes  # weight (resident)
                + t * cout_pad * 4                 # f32 matmul accumulator
                + 2 * t * cout_pad * 4             # pass-2 out tile (dbl-buf)
                + 8 * cout_pad * 4)                # stats / scale / shift

    tm = max(8, min(tm, _round_up(pl.cdiv(m_real, _NCORES), 8)))
    while tm > 256 and _footprint(tm) > tile_budget:
        tm //= 2
    m_pad = _round_up(m_real, _NCORES * tm)
    nbpc = m_pad // tm // _NCORES              # M blocks per core

    # ---- im2col built K-last from NHWC (no transpose of the 9x matrix) ------
    x_nhwc = jnp.transpose(x, (0, 2, 3, 1)).astype(matmul_dtype)
    xp = jnp.pad(x_nhwc,
                 ((0, 0), (padding, padding), (padding, padding), (0, 0)))
    taps = []
    for i in range(kh):
        for j in range(kw):
            taps.append(xp[:, i:i + (oh - 1) * stride + 1:stride,
                           j:j + (ow - 1) * stride + 1:stride, :])
    x_mat = jnp.stack(taps, axis=3).reshape(m_real, k_dim)
    # zero-padded rows convolve to 0 -> transparent to sum/sumsq (÷ m_real)
    x_mat = jnp.pad(x_mat, ((0, m_pad - m_real), (0, 0)))

    # weight rows reordered to match K = (kh, kw, cin); Cout padded to 128
    w_mat = weight.transpose(2, 3, 1, 0).reshape(k_dim, cout)
    w_mat = jnp.pad(w_mat, ((0, 0), (0, cout_pad - cout))).astype(matmul_dtype)

    # ---- pass 1: batch stats, per-core resident partials ("parallel","arb") -
    sum_out, sq_out = pl.pallas_call(
        _conv_stats_kernel,
        out_shape=(
            jax.ShapeDtypeStruct((_NCORES * 8, cout_pad), jnp.float32),
            jax.ShapeDtypeStruct((_NCORES * 8, cout_pad), jnp.float32),
        ),
        grid_spec=pltpu.PrefetchScalarGridSpec(
            num_scalar_prefetch=0,
            grid=(_NCORES, nbpc),
            in_specs=[
                pl.BlockSpec((tm, k_dim), lambda g, j: (g * nbpc + j, 0)),
                pl.BlockSpec((k_dim, cout_pad), lambda g, j: (0, 0)),
            ],
            out_specs=[
                pl.BlockSpec((8, cout_pad), lambda g, j: (g, 0)),
                pl.BlockSpec((8, cout_pad), lambda g, j: (g, 0)),
            ],
        ),
        compiler_params=pltpu.CompilerParams(
            dimension_semantics=("parallel", "arbitrary"),
            vmem_limit_bytes=vmem_limit),
    )(x_mat, w_mat)

    # ---- O(Cout) glue: reduce partials, fold stats + gamma/beta -------------
    m_f = jnp.float32(m_real)
    ch_sum = sum_out.sum(axis=0)               # reduce cores + sublane parts
    ch_sq = sq_out.sum(axis=0)
    mean = ch_sum / m_f
    var = jnp.maximum(ch_sq / m_f - mean * mean, 0.0)   # biased (training BN)
    inv = lax.rsqrt(var + eps)
    gamma_p = jnp.pad(gamma.astype(jnp.float32), (0, cout_pad - cout))
    beta_p = jnp.pad(beta.astype(jnp.float32), (0, cout_pad - cout))
    scale = (gamma_p * inv).reshape(1, cout_pad)
    shift = (beta_p - mean * gamma_p * inv).reshape(1, cout_pad)

    # ---- pass 2: recompute conv + BN + ReLU, single HBM write ("parallel") --
    out_mat = pl.pallas_call(
        _conv_bn_relu_kernel,
        out_shape=jax.ShapeDtypeStruct((m_pad, cout_pad), jnp.float32),
        grid_spec=pltpu.PrefetchScalarGridSpec(
            num_scalar_prefetch=0,
            grid=(m_pad // tm,),
            in_specs=[
                pl.BlockSpec((tm, k_dim), lambda i: (i, 0)),
                pl.BlockSpec((k_dim, cout_pad), lambda i: (0, 0)),
                pl.BlockSpec((1, cout_pad), lambda i: (0, 0)),
                pl.BlockSpec((1, cout_pad), lambda i: (0, 0)),
            ],
            out_specs=pl.BlockSpec((tm, cout_pad), lambda i: (i, 0)),
        ),
        compiler_params=pltpu.CompilerParams(
            dimension_semantics=("parallel",),
            vmem_limit_bytes=vmem_limit),
    )(x_mat, w_mat, scale, shift)

    # slice to the real channels FIRST, then the cheap reshape/transpose
    out = out_mat[:m_real, :cout]
    return out.reshape(n, oh, ow, cout).transpose(0, 3, 1, 2)


def _reference(x, weight, gamma, beta, *, stride=1, padding=1, eps=1e-5):
    y = lax.conv_general_dilated(
        x, weight, window_strides=(stride, stride),
        padding=((padding, padding), (padding, padding)),
        dimension_numbers=("NCHW", "OIHW", "NCHW"))
    mean = y.mean(axis=(0, 2, 3), keepdims=True)
    var = y.var(axis=(0, 2, 3), keepdims=True)            # biased, training BN
    y = (y - mean) / jnp.sqrt(var + eps)
    y = y * gamma.reshape(1, -1, 1, 1) + beta.reshape(1, -1, 1, 1)
    return jnp.maximum(y, 0.0)


if __name__ == "__main__":
    key = jax.random.PRNGKey(0)
    k_x, k_w, k_g, k_b = jax.random.split(key, 4)

    # BasicConv(in_planes=4, out_planes=8, kernel_size=3, stride=1, padding=1)
    N, Cin, H, W = 2, 4, 16, 16
    Cout, KH, KW = 8, 3, 3

    x = jax.random.normal(k_x, (N, Cin, H, W), jnp.float32)
    weight = jax.random.normal(k_w, (Cout, Cin, KH, KW), jnp.float32) * 0.1
    gamma = 1.0 + 0.1 * jax.random.normal(k_g, (Cout,), jnp.float32)
    beta = 0.1 * jax.random.normal(k_b, (Cout,), jnp.float32)

    ref = _reference(x, weight, gamma, beta, stride=1, padding=1)

    # bf16 operands (default / production path): loosened parity tolerance
    out_bf16 = basic_conv(x, weight, gamma, beta, stride=1, padding=1)
    out_bf16 = jax.block_until_ready(out_bf16)
    assert out_bf16.shape == ref.shape == (N, Cout, H, W)
    assert jnp.allclose(out_bf16, ref, atol=3e-2, rtol=3e-2), \
        f"bf16 max abs err {jnp.max(jnp.abs(out_bf16 - ref))}"

    # f32 operands: tight parity with the f32 PyTorch/XLA reference
    out_f32 = basic_conv(x, weight, gamma, beta, stride=1, padding=1,
                         matmul_dtype=jnp.float32)
    out_f32 = jax.block_until_ready(out_f32)
    assert jnp.allclose(out_f32, ref, atol=1e-4, rtol=1e-4), \
        f"f32 max abs err {jnp.max(jnp.abs(out_f32 - ref))}"

    print("KERNEL_OK")
</pallas_src>

<mosaic_0001>
module attributes {stable_mosaic.version = 11 : i64} {
  func.func @_conv_stats_kernel(%arg0: i32, %arg1: i32, %arg2: memref<256x36xbf16, #tpu.memory_space<vmem>>, %arg3: memref<36x128xbf16, #tpu.memory_space<vmem>>, %arg4: memref<8x128xf32, #tpu.memory_space<vmem>>, %arg5: memref<8x128xf32, #tpu.memory_space<vmem>>) attributes {dimension_semantics = [#tpu.dimension_semantics<parallel>, #tpu.dimension_semantics<arbitrary>], iteration_bounds = array<i64: 2, 1>, scalar_prefetch = 0 : i64, scratch_operands = 0 : i64, tpu.core_type = #tpu.core_type<tc>, window_params = [{transform_indices = @transform_0, window_bounds = array<i64: 256, 36>}, {pipeline_mode = #tpu.pipeline_mode<synchronous>, transform_indices = @transform_1, window_bounds = array<i64: 36, 128>}, {transform_indices = @transform_2, window_bounds = array<i64: 8, 128>}, {transform_indices = @transform_3, window_bounds = array<i64: 8, 128>}]} {
    %c0 = arith.constant 0 : index
    %c0_0 = arith.constant 0 : index
    %0 = vector.load %arg2[%c0, %c0_0] : memref<256x36xbf16, #tpu.memory_space<vmem>>, vector<256x36xbf16>
    %c0_1 = arith.constant 0 : index
    %c0_2 = arith.constant 0 : index
    %1 = vector.load %arg3[%c0_1, %c0_2] : memref<36x128xbf16, #tpu.memory_space<vmem>>, vector<36x128xbf16>
    %cst = arith.constant dense<0.000000e+00> : vector<256x128xf32>
    %2 = tpu.matmul %0, %1, %cst {dimension_numbers = #tpu.dot_dimension_numbers<[1], [0], [0], [1], [0, 0, 1, 1], [], []>} : vector<256x36xbf16>, vector<36x128xbf16>, vector<256x128xf32> -> vector<256x128xf32>
    %c0_i32 = arith.constant 0 : i32
    %3 = arith.cmpi eq, %arg1, %c0_i32 : i32
    %4 = arith.extui %3 : i1 to i32
    %c0_i32_3 = arith.constant 0 : i32
    %5 = arith.cmpi ne, %4, %c0_i32_3 : i32
    scf.if %5 {
      %cst_14 = arith.constant 0.000000e+00 : f32
      %16 = vector.broadcast %cst_14 : f32 to vector<8x128xf32>
      %c0_15 = arith.constant 0 : index
      %c0_16 = arith.constant 0 : index
      %17 = vector.load %arg4[%c0_15, %c0_16] : memref<8x128xf32, #tpu.memory_space<vmem>>, vector<8x128xf32>
      tpu.vector_store %arg4[%c0_15, %c0_16], %16 {strides = array<i32>} : memref<8x128xf32, #tpu.memory_space<vmem>>, vector<8x128xf32>,
      %cst_17 = arith.constant 0.000000e+00 : f32
      %18 = vector.broadcast %cst_17 : f32 to vector<8x128xf32>
      %c0_18 = arith.constant 0 : index
      %c0_19 = arith.constant 0 : index
      %19 = vector.load %arg5[%c0_18, %c0_19] : memref<8x128xf32, #tpu.memory_space<vmem>>, vector<8x128xf32>
      tpu.vector_store %arg5[%c0_18, %c0_19], %18 {strides = array<i32>} : memref<8x128xf32, #tpu.memory_space<vmem>>, vector<8x128xf32>,
    } else {
    }
    %6 = vector.shape_cast %2 : vector<256x128xf32> to vector<32x8x128xf32>
    %c0_4 = arith.constant 0 : index
    %c0_5 = arith.constant 0 : index
    %7 = vector.load %arg4[%c0_4, %c0_5] : memref<8x128xf32, #tpu.memory_space<vmem>>, vector<8x128xf32>
    %cst_6 = arith.constant dense<0.000000e+00> : vector<8x128xf32>
    %8 = vector.multi_reduction <add>, %6, %cst_6 [0] : vector<32x8x128xf32> to vector<8x128xf32>
    %9 = arith.addf %7, %8 : vector<8x128xf32>
    %c0_7 = arith.constant 0 : index
    %c0_8 = arith.constant 0 : index
    %10 = vector.load %arg4[%c0_7, %c0_8] : memref<8x128xf32, #tpu.memory_space<vmem>>, vector<8x128xf32>
    tpu.vector_store %arg4[%c0_7, %c0_8], %9 {strides = array<i32>} : memref<8x128xf32, #tpu.memory_space<vmem>>, vector<8x128xf32>,
    %c0_9 = arith.constant 0 : index
    %c0_10 = arith.constant 0 : index
    %11 = vector.load %arg5[%c0_9, %c0_10] : memref<8x128xf32, #tpu.memory_space<vmem>>, vector<8x128xf32>
    %12 = arith.mulf %6, %6 : vector<32x8x128xf32>
    %cst_11 = arith.constant dense<0.000000e+00> : vector<8x128xf32>
    %13 = vector.multi_reduction <add>, %12, %cst_11 [0] : vector<32x8x128xf32> to vector<8x128xf32>
    %14 = arith.addf %11, %13 : vector<8x128xf32>
    %c0_12 = arith.constant 0 : index
    %c0_13 = arith.constant 0 : index
    %15 = vector.load %arg5[%c0_12, %c0_13] : memref<8x128xf32, #tpu.memory_space<vmem>>, vector<8x128xf32>
    tpu.vector_store %arg5[%c0_12, %c0_13], %14 {strides = array<i32>} : memref<8x128xf32, #tpu.memory_space<vmem>>, vector<8x128xf32>,
    return
  }
  func.func @transform_0(%arg0: i32, %arg1: i32) -> (i32, i32) {
    %c1_i32 = arith.constant 1 : i32
    %0 = arith.muli %arg0, %c1_i32 : i32
    %1 = arith.addi %0, %arg1 : i32
    %c0_i32 = arith.constant 0 : i32
    %c0_i32_0 = arith.constant 0 : i32
    return %1, %c0_i32 : i32, i32
  }
  func.func @transform_1(%arg0: i32, %arg1: i32) -> (i32, i32) {
    %c0_i32 = arith.constant 0 : i32
    %c0_i32_0 = arith.constant 0 : i32
    %c0_i32_1 = arith.constant 0 : i32
    return %c0_i32, %c0_i32_0 : i32, i32
  }
  func.func @transform_2(%arg0: i32, %arg1: i32) -> (i32, i32) {
    %c0_i32 = arith.constant 0 : i32
    %c0_i32_0 = arith.constant 0 : i32
    return %arg0, %c0_i32 : i32, i32
  }
  func.func @transform_3(%arg0: i32, %arg1: i32) -> (i32, i32) {
    %c0_i32 = arith.constant 0 : i32
    %c0_i32_0 = arith.constant 0 : i32
    return %arg0, %c0_i32 : i32, i32
  }
}

</mosaic_0001>

<llo_original>
// kernel: tpu_custom_call.1
$region0: #{tpu_custom_call.1}
  #allocation0 [shape = 'u32[]', space=smem, size = 0x4, offset = 0x4, fixed_abs, tag = 'smem constant byte address 0x4 - core index']
  #allocation1 [shape = 'u32[144,128]{1,0:T(1,128)}', space=vmem, size = 0x12000, scoped, tag = 'internal scratch']
  %s0 = inlined_call_operand.vmem [shape: bf16[512,36], index: 0, kind: input, shape index: {}]
  %s1 = inlined_call_operand.vmem [shape: bf16[36,128], index: 1, kind: input, shape index: {}]
  %s2 = inlined_call_operand.hbm [shape: f32[16,128], index: 2, kind: output, shape index: {0}]
  %s3 = inlined_call_operand.hbm [shape: f32[16,128], index: 3, kind: output, shape index: {1}]
  %4 = xla_tuple %s2, %s3
  %s5 = sld [smem:[#allocation0]]
  $region53: #{tpu_custom_call.1} parent=0
    _
  %s7 = ssub.s32 1, %s5
  %s8 = scalar_select 0, %s7, %s5
  $region1: #{tpu_custom_call.1} parent=0
    #allocation2 [shape = 'u8[8192]{0}', space=vmem, size = 0x2000, scoped, tag = 'output window, operand 0']
    #allocation3 [shape = 's32[2]{0}', space=sflag, size = 0x8, scoped, tag = 'scoped memory for tpu_custom_call.1']
    #allocation4 [shape = 'u8[8192]{0}', space=vmem, size = 0x2000, scoped, tag = 'output window, operand 1']
    #allocation5 [shape = 's32[2]{0}', space=sflag, size = 0x8, scoped, tag = 'scoped memory for tpu_custom_call.1']
    %9 = vsyncpa [#allocation3], 0
    %s10 = scalar_lea.sflag [#allocation3], 1
    %11 = vsyncpa %s10, 0
    %12 = vsyncpa [#allocation5], 0
    %s13 = scalar_lea.sflag [#allocation5], 1
    %14 = vsyncpa %s13, 0
    loop: start=0, step=1, limit=4
    $region2: #{tpu_custom_call.1} parent=1 // loop_pre_header
      _
    $region3: #{tpu_custom_call.1} parent=1 // loop_header
      %s16 = sphi 0, %s20
      %p17 = scmp.ge.s32.totalorder %s16, 4
      %s23 = sphi 0, %s35
      %s24 = sphi 0, %s31
      %s25 = sphi 0, %s23
      %s26 = sphi 0, %s24
      %s27 = sphi 0, %s25
      %s28 = sphi 0, %s26
      %s40 = sphi 0, %s42
      %s43 = sphi 0, %s40
      %s44 = sphi 0, %s43
      %s60 = sphi 0, %s44
      %s64 = sphi 0, %s64
      %s66 = sphi 0, %s64
      %s67 = sphi 0, %s66
      %s81 = sphi 0, %s67
      %s87 = sphi 0, %s89
      %s90 = sphi 0, %s87
      %s91 = sphi 0, %s90
      %s107 = sphi 0, %s91
      %s113 = sphi 0, %s115
      %s116 = sphi 0, %s113
      %s117 = sphi 0, %s116
      %s133 = sphi 0, %s117
    $region4: #{tpu_custom_call.1} parent=1 // loop_header_branch
      %19 = sbr.rel (%p17) target = $region8
    $region5: #{tpu_custom_call.1} parent=1 // loop_body
      %s21 = ssub.s32 %s16, 1
      %s22 = ssub.s32 %s16, 2
      %s29 = sadd.s32 1, %s24
      %p30 = scmp.ge.s32.totalorder %s29, 1
      %s31 = scalar_select %p30, 0, %s29
      %s32 = sadd.s32 1, %s23
      %s33 = scalar_select %p30, %s32, %s23
      %p34 = scmp.ge.s32.totalorder %s33, 2
      %s35 = scalar_select %p34, 0, %s33
      %s36 = sadd.s32 %s23, %s24
      %s37 = sadd.s32 %s35, %s31
      %s38 = ssub.s32 %s36, %s37
      %p39 = scmp.eq.s32.totalorder %s38, 0
      %s41 = sadd.s32 %s40, 1
      %s42 = scalar_select %p39, %s40, %s41
      %p45 = pneg %p39
      %p46 = scmp.eq.s32.totalorder %s16, 1
      %p47 = por %p45, %p46
      %p48 = scmp.ne.s32.totalorder %s40, %s43
      %p49 = scmp.eq.s32.totalorder %s16, 0
      %p50 = por %p48, %p49
      %p51 = scmp.ne.s32.totalorder %s40, %s43
      %p52 = scmp.eq.s32.totalorder %s21, 1
      %p53 = por %p51, %p52
      %p54 = scmp.ne.s32.totalorder %s43, %s44
      %p55 = scmp.eq.s32.totalorder %s21, 0
      %p56 = por %p54, %p55
      %p57 = scmp.ne.s32.totalorder %s43, %s44
      %p58 = scmp.eq.s32.totalorder %s22, 1
      %p59 = por %p57, %p58
      %p61 = scmp.ne.s32.totalorder %s44, %s60
      %p62 = scmp.eq.s32.totalorder %s22, 0
      %p63 = por %p61, %p62
      %s65 = sadd.s32 %s64, 1
      %p68 = scmp.eq.s32.totalorder %s16, 1
      %p69 = scmp.ne.s32.totalorder %s64, %s66
      %p70 = scmp.eq.s32.totalorder %s16, 0
      %p71 = por %p69, %p70
      %p72 = scmp.ne.s32.totalorder %s64, %s66
      %p73 = scmp.eq.s32.totalorder %s21, 1
      %p74 = por %p72, %p73
      %p75 = scmp.ne.s32.totalorder %s66, %s67
      %p76 = scmp.eq.s32.totalorder %s21, 0
      %p77 = por %p75, %p76
      %p78 = scmp.ne.s32.totalorder %s66, %s67
      %p79 = scmp.eq.s32.totalorder %s22, 1
      %p80 = por %p78, %p79
      %p82 = scmp.ne.s32.totalorder %s67, %s81
      %p83 = scmp.eq.s32.totalorder %s22, 0
      %p84 = por %p82, %p83
      %s85 = ssub.s32 %s23, %s35
      %p86 = scmp.eq.s32.totalorder %s85, 0
      %s88 = sadd.s32 %s87, 1
      %s89 = scalar_select %p86, %s87, %s88
      %p92 = pneg %p86
      %p93 = scmp.eq.s32.totalorder %s16, 1
      %p94 = por %p92, %p93
      %p95 = scmp.ne.s32.totalorder %s87, %s90
      %p96 = scmp.eq.s32.totalorder %s16, 0
      %p97 = por %p95, %p96
      %p98 = scmp.ne.s32.totalorder %s87, %s90
      %p99 = scmp.eq.s32.totalorder %s21, 1
      %p100 = por %p98, %p99
      %p101 = scmp.ne.s32.totalorder %s90, %s91
      %p102 = scmp.eq.s32.totalorder %s21, 0
      %p103 = por %p101, %p102
      %p104 = scmp.ne.s32.totalorder %s90, %s91
      %p105 = scmp.eq.s32.totalorder %s22, 1
      %p106 = por %p104, %p105
      %p108 = scmp.ne.s32.totalorder %s91, %s107
      %p109 = scmp.eq.s32.totalorder %s22, 0
      %p110 = por %p108, %p109
      %s111 = ssub.s32 %s23, %s35
      %p112 = scmp.eq.s32.totalorder %s111, 0
      %s114 = sadd.s32 %s113, 1
      %s115 = scalar_select %p112, %s113, %s114
      %p118 = pneg %p112
      %p119 = scmp.eq.s32.totalorder %s16, 1
      %p120 = por %p118, %p119
      %p121 = scmp.ne.s32.totalorder %s113, %s116
      %p122 = scmp.eq.s32.totalorder %s16, 0
      %p123 = por %p121, %p122
      %p124 = scmp.ne.s32.totalorder %s113, %s116
      %p125 = scmp.eq.s32.totalorder %s21, 1
      %p126 = por %p124, %p125
      %p127 = scmp.ne.s32.totalorder %s116, %s117
      %p128 = scmp.eq.s32.totalorder %s21, 0
      %p129 = por %p127, %p128
      %p130 = scmp.ne.s32.totalorder %s116, %s117
      %p131 = scmp.eq.s32.totalorder %s22, 1
      %p132 = por %p130, %p131
      %p134 = scmp.ne.s32.totalorder %s117, %s133
      %p135 = scmp.eq.s32.totalorder %s22, 0
      %p136 = por %p134, %p135
      %p137 = scmp.le.s32.totalorder 1, %s16
      %p138 = scmp.lt.s32.totalorder %s16, 3
      %p139 = pnand %p137, %p138
      %p140 = pneg %p139
      // Predicated region
      $region9: #{tpu_custom_call.1} parent=5 // pred_check
        _
      $region10: #{tpu_custom_call.1} parent=5 // pred_check_branch
        %142 = sbr.rel (%p139) target = $region12
      $region11: #{tpu_custom_call.1} parent=5 // pred_region
        %s143 = ssub.s32 %s16, 1
        // Predicated region
        $region13: #{tpu_custom_call.1} parent=11 // pred_check
          %p144 = pneg %p77
        $region14: #{tpu_custom_call.1} parent=11 // pred_check_branch
          %146 = sbr.rel (%p144) target = $region16
        $region15: #{tpu_custom_call.1} parent=11 // pred_region
          _
        $region16: #{tpu_custom_call.1} parent=11 // pred_fallthru
          _
      $region12: #{tpu_custom_call.1} parent=5 // pred_fallthru
        _
      %p147 = scmp.lt.s32.totalorder %s16, 2
      // Predicated region
      $region17: #{tpu_custom_call.1} parent=5 // pred_check
        %p148 = pneg %p147
      $region18: #{tpu_custom_call.1} parent=5 // pred_check_branch
        %150 = sbr.rel (%p148) target = $region20
      $region19: #{tpu_custom_call.1} parent=5 // pred_region
        // Predicated region
        $region21: #{tpu_custom_call.1} parent=19 // pred_check
          %p151 = pneg %p50
        $region22: #{tpu_custom_call.1} parent=19 // pred_check_branch
          %153 = sbr.rel (%p151) target = $region24
        $region23: #{tpu_custom_call.1} parent=19 // pred_region
          %s154 = sadd.s32 %s23, %s24
          %s155 = smul.u32 32, %s154
          %p156 = scmp.lt.s32.totalorder %s155, 63
          %s157 = scalar_select %p156, %s155, 63
          %s158 = smul.addr %s157, 4
          %s159 = scalar_lea.vmem %s0, %s158
          %s160 = sadd.s32 %s23, %s24
          %s161 = smul.u32 32, %s160
        $region24: #{tpu_custom_call.1} parent=19 // pred_fallthru
          _
      $region20: #{tpu_custom_call.1} parent=5 // pred_fallthru
        _
      %p162 = scmp.le.s32.totalorder 1, %s16
      %p163 = scmp.lt.s32.totalorder %s16, 3
      %p164 = pnand %p162, %p163
      %p165 = pneg %p164
      // Predicated region
      $region25: #{tpu_custom_call.1} parent=5 // pred_check
        _
      $region26: #{tpu_custom_call.1} parent=5 // pred_check_branch
        %167 = sbr.rel (%p164) target = $region28
      $region27: #{tpu_custom_call.1} parent=5 // pred_region
        %s168 = ssub.s32 %s16, 1
        %s169 = sadd.s32 %s25, %s26
        %s170 = smul.u32 32, %s169
        %p171 = scmp.lt.s32.totalorder %s170, 63
        %s172 = scalar_select %p171, %s170, 63
        %s173 = smul.addr %s172, 4
        %s174 = scalar_lea.vmem %s0, %s173
        %p175 = pneg %p56
        %p176 = pneg %p53
        %p177 = pneg %p77
        %p178 = pneg %p74
        %p179 = pneg %p103
        %p180 = pneg %p100
        %s181 = sand.u32 %s90, 1
        %s182 = scalar_lea.sflag [#allocation3], %s181
        %s183 = sand.u32 %s90, 1
        %s184 = smul.addr %s183, 8
        %s185 = scalar_lea.vmem [#allocation2], %s184
        %p186 = pneg %p129
        %p187 = pneg %p126
        %s188 = sand.u32 %s116, 1
        %s189 = scalar_lea.sflag [#allocation5], %s188
        %s190 = sand.u32 %s116, 1
        %s191 = smul.addr %s190, 8
        %s192 = scalar_lea.vmem [#allocation4], %s191
        %s193 = sadd.s32 %s25, %s26
        %s194 = smul.u32 32, %s193
        %p195 = scmp.lt.s32.totalorder %s194, 63
        %s196 = scalar_select %p195, %s194, 63
        %s197 = smul.addr %s196, 4
        %s198 = scalar_lea.vmem %s0, %s197
        %s199 = sadd.s32 %s25, %s26
        %s200 = smul.u32 32, %s199
        %v202 = vld [vmem:[%s198] sm:$0xf]
        %v203 = vld [vmem:[%s198 + $0x4] sm:$0xf]
        %v204 = vld [vmem:[%s198 + $0x8] sm:$0xf]
        %v205 = vld [vmem:[%s198 + $0xc] sm:$0xf]
        %v206 = vld [vmem:[%s198 + $0x10] sm:$0xf]
        %v207 = vld [vmem:[%s198 + $0x14] sm:$0xf]
        %v208 = vld [vmem:[%s198 + $0x18] sm:$0xf]
        %v209 = vld [vmem:[%s198 + $0x1c] sm:$0xf]
        %v210 = vld [vmem:[%s198 + $0x20] sm:$0xf]
        %v211 = vld [vmem:[%s198 + $0x24] sm:$0xf]
        %v212 = vld [vmem:[%s198 + $0x28] sm:$0xf]
        %v213 = vld [vmem:[%s198 + $0x2c] sm:$0xf]
        %v214 = vld [vmem:[%s198 + $0x30] sm:$0xf]
        %v215 = vld [vmem:[%s198 + $0x34] sm:$0xf]
        %v216 = vld [vmem:[%s198 + $0x38] sm:$0xf]
        %v217 = vld [vmem:[%s198 + $0x3c] sm:$0xf]
        %v218 = vld [vmem:[%s198 + $0x40] sm:$0xf]
        %v219 = vld [vmem:[%s198 + $0x44] sm:$0xf]
        %v220 = vld [vmem:[%s198 + $0x48] sm:$0xf]
        %v221 = vld [vmem:[%s198 + $0x4c] sm:$0xf]
        %v222 = vld [vmem:[%s198 + $0x50] sm:$0xf]
        %v223 = vld [vmem:[%s198 + $0x54] sm:$0xf]
        %v224 = vld [vmem:[%s198 + $0x58] sm:$0xf]
        %v225 = vld [vmem:[%s198 + $0x5c] sm:$0xf]
        %v226 = vld [vmem:[%s198 + $0x60] sm:$0xf]
        %v227 = vld [vmem:[%s198 + $0x64] sm:$0xf]
        %v228 = vld [vmem:[%s198 + $0x68] sm:$0xf]
        %v229 = vld [vmem:[%s198 + $0x6c] sm:$0xf]
        %v230 = vld [vmem:[%s198 + $0x70] sm:$0xf]
        %v231 = vld [vmem:[%s198 + $0x74] sm:$0xf]
        %v232 = vld [vmem:[%s198 + $0x78] sm:$0xf]
        %v233 = vld [vmem:[%s198 + $0x7c] sm:$0xf]
        %v234 = vld [vmem:[%s1] sm:$0xf]
        %v235 = vld [vmem:[%s1 + $0x4] sm:$0xf]
        %v236 = vld [vmem:[%s1 + $0x8] sm:$0xf]
        %v237 = vld [vmem:[%s1 + $0xc] sm:$0xf]
        %v238 = vld [vmem:[%s1 + $0x10] sm:$0x3]
        %v271 = vunpack.c.l.b16 %v202
        %v272 = vunpack.c.l.b16 %v203
        %v273 = vunpack.c.l.b16 %v204
        %v274 = vunpack.c.l.b16 %v205
        %v275 = vunpack.c.l.b16 %v206
        %v276 = vunpack.c.l.b16 %v207
        %v277 = vunpack.c.l.b16 %v208
        %v278 = vunpack.c.l.b16 %v209
        %v279 = vunpack.c.l.b16 %v210
        %v280 = vunpack.c.l.b16 %v211
        %v281 = vunpack.c.l.b16 %v212
        %v282 = vunpack.c.l.b16 %v213
        %v283 = vunpack.c.l.b16 %v214
        %v284 = vunpack.c.l.b16 %v215
        %v285 = vunpack.c.l.b16 %v216
        %v286 = vunpack.c.l.b16 %v217
        %v287 = vunpack.c.l.b16 %v218
        %v288 = vunpack.c.l.b16 %v219
        %v289 = vunpack.c.l.b16 %v220
        %v290 = vunpack.c.l.b16 %v221
        %v291 = vunpack.c.l.b16 %v222
        %v292 = vunpack.c.l.b16 %v223
        %v293 = vunpack.c.l.b16 %v224
        %v294 = vunpack.c.l.b16 %v225
        %v295 = vunpack.c.l.b16 %v226
        %v296 = vunpack.c.l.b16 %v227
        %v297 = vunpack.c.l.b16 %v228
        %v298 = vunpack.c.l.b16 %v229
        %v299 = vunpack.c.l.b16 %v230
        %v300 = vunpack.c.l.b16 %v231
        %v301 = vunpack.c.l.b16 %v232
        %v302 = vunpack.c.l.b16 %v233
        %v303 = vpack.c.b16 %v272, %v271
        %v304 = vpack.c.b16 %v274, %v273
        %v305 = vpack.c.b16 %v276, %v275
        %v306 = vpack.c.b16 %v278, %v277
        %v307 = vpack.c.b16 %v280, %v279
        %v308 = vpack.c.b16 %v282, %v281
        %v309 = vpack.c.b16 %v284, %v283
        %v310 = vpack.c.b16 %v286, %v285
        %v311 = vpack.c.b16 %v288, %v287
        %v312 = vpack.c.b16 %v290, %v289
        %v313 = vpack.c.b16 %v292, %v291
        %v314 = vpack.c.b16 %v294, %v293
        %v315 = vpack.c.b16 %v296, %v295
        %v316 = vpack.c.b16 %v298, %v297
        %v317 = vpack.c.b16 %v300, %v299
        %v318 = vpack.c.b16 %v302, %v301
        %v324 = vunpack.c.l.b16 %v234
        %v325 = vunpack.c.l.b16 %v235
        %v326 = vunpack.c.l.b16 %v236
        %v327 = vunpack.c.l.b16 %v237
        %v328 = vunpack.c.l.b16 %v238
        %v329 = vpack.c.b16 %v325, %v324
        %v330 = vpack.c.b16 %v327, %v326
        %v331 = vpack.c.b16 %v328, %v328
        %vm334 = vcmask 293888
        %v336 = vsel %vm334, %v303, 0
        %v339 = vsel %vm334, %v304, 0
        %v342 = vsel %vm334, %v305, 0
        %v345 = vsel %vm334, %v306, 0
        %v348 = vsel %vm334, %v307, 0
        %v351 = vsel %vm334, %v308, 0
        %v354 = vsel %vm334, %v309, 0
        %v357 = vsel %vm334, %v310, 0
        %v360 = vsel %vm334, %v311, 0
        %v363 = vsel %vm334, %v312, 0
        %v366 = vsel %vm334, %v313, 0
        %v369 = vsel %vm334, %v314, 0
        %v372 = vsel %vm334, %v315, 0
        %v375 = vsel %vm334, %v316, 0
        %v378 = vsel %vm334, %v317, 0
        %v381 = vsel %vm334, %v318, 0
        %vm383 = vcmask 1041408
        %v385 = vsel %vm383, %v331, 0
        %387 = vmatprep.subr.bf16.mxu0 0
        %388 = vmatpush1.bf16.msra.mxu0 0
        %389 = vmatprep.subr.bf16.mxu0 0
        %390 = vmatpush1.bf16.msra.mxu0 0
        %391 = vmatprep.subr.bf16.mxu0 0
        %392 = vmatpush1.bf16.msra.mxu0 0
        %393 = vmatprep.subr.bf16.mxu0 0
        %394 = vmatpush1.bf16.msra.mxu0 0
        %395 = vmatprep.subr.bf16.mxu0 0
        %396 = vmatpush1.bf16.msra.mxu0 0
        %397 = vmatprep.subr.bf16.mxu0 0
        %398 = vmatpush1.bf16.msra.mxu0 %v385
        %399 = vmatprep.subr.bf16.mxu0 0
        %400 = vmatpush1.bf16.msra.mxu0 %v330
        %401 = vmatprep.subr.bf16.mxu0 0
        %402 = vmatpush1.bf16.msra.mxu0 %v329
        %403 = vmatprep.subr.bf16.mxu0 0
        %404 = vmatpush2.bf16.msra.mxu0 0
        %405 = vmatprep.subr.bf16.mxu0 0
        %406 = vmatpush2.bf16.msra.mxu0 0
        %407 = vmatprep.subr.bf16.mxu0 0
        %408 = vmatpush2.bf16.msra.mxu0 0
        %409 = vmatprep.subr.bf16.mxu0 0
        %410 = vmatpush2.bf16.msra.mxu0 0
        %411 = vmatprep.subr.bf16.mxu0 0
        %412 = vmatpush2.bf16.msra.mxu0 0
        %413 = vmatprep.subr.bf16.mxu0 0
        %414 = vmatpush2.bf16.msra.mxu0 0
        %415 = vmatprep.subr.bf16.mxu0 0
        %416 = vmatpush2.bf16.msra.mxu0 0
        %417 = vmatprep.subr.bf16.mxu0 0
        %418 = vmatpush2.bf16.msra.mxu0 0
        %419 = vmatprep.mubr.bf16.mxu0 0
        %420 = vmatmul.mubr.bf16.gmra.mxu0 %v336
        %v421 = vpop.f32.mrf.mxu0
        %v422 = vadd.f32 0.0, %v421
        %v423 = vpop.f32.mrf.mxu0
        %v424 = vpop.f32.mrf.mxu0
        %v425 = vadd.f32 0.0, %v424
        %v426 = vpop.f32.mrf.mxu0
        %427 = vmatprep.mubr.bf16.mxu0 0
        %428 = vmatmul.mubr.bf16.gmra.mxu0 %v339
        %v429 = vpop.f32.mrf.mxu0
        %v430 = vadd.f32 0.0, %v429
        %v431 = vpop.f32.mrf.mxu0
        %v432 = vpop.f32.mrf.mxu0
        %v433 = vadd.f32 0.0, %v432
        %v434 = vpop.f32.mrf.mxu0
        %435 = vmatprep.mubr.bf16.mxu0 0
        %436 = vmatmul.mubr.bf16.gmra.mxu0 %v342
        %v437 = vpop.f32.mrf.mxu0
        %v438 = vadd.f32 0.0, %v437
        %v439 = vpop.f32.mrf.mxu0
        %v440 = vpop.f32.mrf.mxu0
        %v441 = vadd.f32 0.0, %v440
        %v442 = vpop.f32.mrf.mxu0
        %443 = vmatprep.mubr.bf16.mxu0 0
        %444 = vmatmul.mubr.bf16.gmra.mxu0 %v345
        %v445 = vpop.f32.mrf.mxu0
        %v446 = vadd.f32 0.0, %v445
        %v447 = vpop.f32.mrf.mxu0
        %v448 = vpop.f32.mrf.mxu0
        %v449 = vadd.f32 0.0, %v448
        %v450 = vpop.f32.mrf.mxu0
        %451 = vmatprep.mubr.bf16.mxu0 0
        %452 = vmatmul.mubr.bf16.gmra.mxu0 %v348
        %v453 = vpop.f32.mrf.mxu0
        %v454 = vadd.f32 0.0, %v453
        %v455 = vpop.f32.mrf.mxu0
        %v456 = vpop.f32.mrf.mxu0
        %v457 = vadd.f32 0.0, %v456
        %v458 = vpop.f32.mrf.mxu0
        %459 = vmatprep.mubr.bf16.mxu0 0
        %460 = vmatmul.mubr.bf16.gmra.mxu0 %v351
        %v461 = vpop.f32.mrf.mxu0
        %v462 = vadd.f32 0.0, %v461
        %v463 = vpop.f32.mrf.mxu0
        %v464 = vpop.f32.mrf.mxu0
        %v465 = vadd.f32 0.0, %v464
        %v466 = vpop.f32.mrf.mxu0
        %467 = vmatprep.mubr.bf16.mxu0 0
        %468 = vmatmul.mubr.bf16.gmra.mxu0 %v354
        %v469 = vpop.f32.mrf.mxu0
        %v470 = vadd.f32 0.0, %v469
        %v471 = vpop.f32.mrf.mxu0
        %v472 = vpop.f32.mrf.mxu0
        %v473 = vadd.f32 0.0, %v472
        %v474 = vpop.f32.mrf.mxu0
        %475 = vmatprep.mubr.bf16.mxu0 0
        %476 = vmatmul.mubr.bf16.gmra.mxu0 %v357
        %v477 = vpop.f32.mrf.mxu0
        %v478 = vadd.f32 0.0, %v477
        %v479 = vpop.f32.mrf.mxu0
        %v480 = vpop.f32.mrf.mxu0
        %v481 = vadd.f32 0.0, %v480
        %v482 = vpop.f32.mrf.mxu0
        %483 = vmatprep.mubr.bf16.mxu0 0
        %484 = vmatmul.mubr.bf16.gmra.mxu0 %v360
        %v485 = vpop.f32.mrf.mxu0
        %v486 = vadd.f32 0.0, %v485
        %v487 = vpop.f32.mrf.mxu0
        %v488 = vpop.f32.mrf.mxu0
        %v489 = vadd.f32 0.0, %v488
        %v490 = vpop.f32.mrf.mxu0
        %491 = vmatprep.mubr.bf16.mxu0 0
        %492 = vmatmul.mubr.bf16.gmra.mxu0 %v363
        %v493 = vpop.f32.mrf.mxu0
        %v494 = vadd.f32 0.0, %v493
        %v495 = vpop.f32.mrf.mxu0
        %v496 = vpop.f32.mrf.mxu0
        %v497 = vadd.f32 0.0, %v496
        %v498 = vpop.f32.mrf.mxu0
        %499 = vmatprep.mubr.bf16.mxu0 0
        %500 = vmatmul.mubr.bf16.gmra.mxu0 %v366
        %v501 = vpop.f32.mrf.mxu0
        %v502 = vadd.f32 0.0, %v501
        %v503 = vpop.f32.mrf.mxu0
        %v504 = vpop.f32.mrf.mxu0
        %v505 = vadd.f32 0.0, %v504
        %v506 = vpop.f32.mrf.mxu0
        %507 = vmatprep.mubr.bf16.mxu0 0
        %508 = vmatmul.mubr.bf16.gmra.mxu0 %v369
        %v509 = vpop.f32.mrf.mxu0
        %v510 = vadd.f32 0.0, %v509
        %v511 = vpop.f32.mrf.mxu0
        %v512 = vpop.f32.mrf.mxu0
        %v513 = vadd.f32 0.0, %v512
        %v514 = vpop.f32.mrf.mxu0
        %515 = vmatprep.mubr.bf16.mxu0 0
        %516 = vmatmul.mubr.bf16.gmra.mxu0 %v372
        %v517 = vpop.f32.mrf.mxu0
        %v518 = vadd.f32 0.0, %v517
        %v519 = vpop.f32.mrf.mxu0
        %v520 = vpop.f32.mrf.mxu0
        %v521 = vadd.f32 0.0, %v520
        %v522 = vpop.f32.mrf.mxu0
        %523 = vmatprep.mubr.bf16.mxu0 0
        %524 = vmatmul.mubr.bf16.gmra.mxu0 %v375
        %v525 = vpop.f32.mrf.mxu0
        %v526 = vadd.f32 0.0, %v525
        %v527 = vpop.f32.mrf.mxu0
        %v528 = vpop.f32.mrf.mxu0
        %v529 = vadd.f32 0.0, %v528
        %v530 = vpop.f32.mrf.mxu0
        %531 = vmatprep.mubr.bf16.mxu0 0
        %532 = vmatmul.mubr.bf16.gmra.mxu0 %v378
        %v533 = vpop.f32.mrf.mxu0
        %v534 = vadd.f32 0.0, %v533
        %v535 = vpop.f32.mrf.mxu0
        %v536 = vpop.f32.mrf.mxu0
        %v537 = vadd.f32 0.0, %v536
        %v538 = vpop.f32.mrf.mxu0
        %539 = vmatprep.mubr.bf16.mxu0 0
        %540 = vmatmul.mubr.bf16.gmra.mxu0 %v381
        %v541 = vpop.f32.mrf.mxu0
        %v542 = vadd.f32 0.0, %v541
        %v543 = vpop.f32.mrf.mxu0
        %v544 = vpop.f32.mrf.mxu0
        %v545 = vadd.f32 0.0, %v544
        %v546 = vpop.f32.mrf.mxu0
        %547 = vdwg.mxu0
        %p548 = scmp.eq.s32.totalorder %s26, 0
        // Predicated region
        $region29: #{tpu_custom_call.1} parent=27 // pred_check
          %p549 = pneg %p548
        $region30: #{tpu_custom_call.1} parent=27 // pred_check_branch
          %551 = sbr.rel (%p549) target = $region32
        $region31: #{tpu_custom_call.1} parent=27 // pred_region
          %552 = vst [vmem:[%s185] sm:$0xff] 0.0
          %553 = vst [vmem:[%s192] sm:$0xff] 0.0
        $region32: #{tpu_custom_call.1} parent=27 // pred_fallthru
          _
        %v554 = vld [vmem:[%s185] sm:$0xff]
        %v555 = vadd.f32 %v422, %v425
        %v556 = vadd.f32 %v555, %v430
        %v557 = vadd.f32 %v556, %v433
        %v558 = vadd.f32 %v557, %v438
        %v559 = vadd.f32 %v558, %v441
        %v560 = vadd.f32 %v559, %v446
        %v561 = vadd.f32 %v560, %v449
        %v562 = vadd.f32 %v561, %v454
        %v563 = vadd.f32 %v562, %v457
        %v564 = vadd.f32 %v563, %v462
        %v565 = vadd.f32 %v564, %v465
        %v566 = vadd.f32 %v565, %v470
        %v567 = vadd.f32 %v566, %v473
        %v568 = vadd.f32 %v567, %v478
        %v569 = vadd.f32 %v568, %v481
        %v570 = vadd.f32 %v569, %v486
        %v571 = vadd.f32 %v570, %v489
        %v572 = vadd.f32 %v571, %v494
        %v573 = vadd.f32 %v572, %v497
        %v574 = vadd.f32 %v573, %v502
        %v575 = vadd.f32 %v574, %v505
        %v576 = vadd.f32 %v575, %v510
        %v577 = vadd.f32 %v576, %v513
        %v578 = vadd.f32 %v577, %v518
        %v579 = vadd.f32 %v578, %v521
        %v580 = vadd.f32 %v579, %v526
        %v581 = vadd.f32 %v580, %v529
        %v582 = vadd.f32 %v581, %v534
        %v583 = vadd.f32 %v582, %v537
        %v584 = vadd.f32 %v583, %v542
        %v585 = vadd.f32 %v584, %v545
        %v586 = vadd.f32 %v554, %v585
        %587 = vst [vmem:[%s185] sm:$0xff] %v586
        %v588 = vld [vmem:[%s192] sm:$0xff]
        %v589 = vmul.f32 %v422, %v422
        %v590 = vmul.f32 %v425, %v425
        %v591 = vmul.f32 %v430, %v430
        %v592 = vmul.f32 %v433, %v433
        %v593 = vmul.f32 %v438, %v438
        %v594 = vmul.f32 %v441, %v441
        %v595 = vmul.f32 %v446, %v446
        %v596 = vmul.f32 %v449, %v449
        %v597 = vmul.f32 %v454, %v454
        %v598 = vmul.f32 %v457, %v457
        %v599 = vmul.f32 %v462, %v462
        %v600 = vmul.f32 %v465, %v465
        %v601 = vmul.f32 %v470, %v470
        %v602 = vmul.f32 %v473, %v473
        %v603 = vmul.f32 %v478, %v478
        %v604 = vmul.f32 %v481, %v481
        %v605 = vmul.f32 %v486, %v486
        %v606 = vmul.f32 %v489, %v489
        %v607 = vmul.f32 %v494, %v494
        %v608 = vmul.f32 %v497, %v497
        %v609 = vmul.f32 %v502, %v502
        %v610 = vmul.f32 %v505, %v505
        %v611 = vmul.f32 %v510, %v510
        %v612 = vmul.f32 %v513, %v513
        %v613 = vmul.f32 %v518, %v518
        %v614 = vmul.f32 %v521, %v521
        %v615 = vmul.f32 %v526, %v526
        %v616 = vmul.f32 %v529, %v529
        %v617 = vmul.f32 %v534, %v534
        %v618 = vmul.f32 %v537, %v537
        %v619 = vmul.f32 %v542, %v542
        %v620 = vmul.f32 %v545, %v545
        %v621 = vadd.f32 %v589, %v590
        %v622 = vadd.f32 %v621, %v591
        %v623 = vadd.f32 %v622, %v592
        %v624 = vadd.f32 %v623, %v593
        %v625 = vadd.f32 %v624, %v594
        %v626 = vadd.f32 %v625, %v595
        %v627 = vadd.f32 %v626, %v596
        %v628 = vadd.f32 %v627, %v597
        %v629 = vadd.f32 %v628, %v598
        %v630 = vadd.f32 %v629, %v599
        %v631 = vadd.f32 %v630, %v600
        %v632 = vadd.f32 %v631, %v601
        %v633 = vadd.f32 %v632, %v602
        %v634 = vadd.f32 %v633, %v603
        %v635 = vadd.f32 %v634, %v604
        %v636 = vadd.f32 %v635, %v605
        %v637 = vadd.f32 %v636, %v606
        %v638 = vadd.f32 %v637, %v607
        %v639 = vadd.f32 %v638, %v608
        %v640 = vadd.f32 %v639, %v609
        %v641 = vadd.f32 %v640, %v610
        %v642 = vadd.f32 %v641, %v611
        %v643 = vadd.f32 %v642, %v612
        %v644 = vadd.f32 %v643, %v613
        %v645 = vadd.f32 %v644, %v614
        %v646 = vadd.f32 %v645, %v615
        %v647 = vadd.f32 %v646, %v616
        %v648 = vadd.f32 %v647, %v617
        %v649 = vadd.f32 %v648, %v618
        %v650 = vadd.f32 %v649, %v619
        %v651 = vadd.f32 %v650, %v620
        %v652 = vadd.f32 %v588, %v651
        %653 = vst [vmem:[%s192] sm:$0xff] %v652
        %s654 = sand.u32 %s90, 1
        %s655 = scalar_lea.sflag [#allocation3], %s654
        %s656 = sand.u32 %s90, 1
        %s657 = smul.addr %s656, 8
        %s658 = scalar_lea.vmem [#allocation2], %s657
        %s659 = sand.u32 %s116, 1
        %s660 = scalar_lea.sflag [#allocation5], %s659
        %s661 = sand.u32 %s116, 1
        %s662 = smul.addr %s661, 8
        %s663 = scalar_lea.vmem [#allocation4], %s662
        // Predicated region
        $region33: #{tpu_custom_call.1} parent=27 // pred_check
          %p664 = pneg %p100
        $region34: #{tpu_custom_call.1} parent=27 // pred_check_branch
          %666 = sbr.rel (%p664) target = $region36
        $region35: #{tpu_custom_call.1} parent=27 // pred_region
          %s668 = ssub.s32 128, 128
          %669 = vsyncadd %s655, %s668
          %s670 = smul.addr %s25, 128
          %s671 = scalar_lea.hbm %s2, %s670
          %s673 = sshll.u32 %s658, 4
          %s674 = int_to_ptr.vmem [resolvable:$true] %s673
          %676 = dma.vmem_to_hbm [thread:$0]  %s674, 128, %s671, %s655
        $region36: #{tpu_custom_call.1} parent=27 // pred_fallthru
          _
        // Predicated region
        $region37: #{tpu_custom_call.1} parent=27 // pred_check
          %p677 = pneg %p126
        $region38: #{tpu_custom_call.1} parent=27 // pred_check_branch
          %679 = sbr.rel (%p677) target = $region40
        $region39: #{tpu_custom_call.1} parent=27 // pred_region
          %s681 = ssub.s32 128, 128
          %682 = vsyncadd %s660, %s681
          %s683 = smul.addr %s25, 128
          %s684 = scalar_lea.hbm %s3, %s683
          %s686 = sshll.u32 %s663, 4
          %s687 = int_to_ptr.vmem [resolvable:$true] %s686
          %689 = dma.vmem_to_hbm [thread:$0]  %s687, 128, %s684, %s660
        $region40: #{tpu_custom_call.1} parent=27 // pred_fallthru
          _
      $region28: #{tpu_custom_call.1} parent=5 // pred_fallthru
        _
      %p690 = scmp.le.s32.totalorder 2, %s16
      // Predicated region
      $region41: #{tpu_custom_call.1} parent=5 // pred_check
        %p691 = pneg %p690
      $region42: #{tpu_custom_call.1} parent=5 // pred_check_branch
        %693 = sbr.rel (%p691) target = $region44
      $region43: #{tpu_custom_call.1} parent=5 // pred_region
        %s694 = ssub.s32 %s16, 2
        // Predicated region
        $region45: #{tpu_custom_call.1} parent=43 // pred_check
          %p695 = pneg %p106
        $region46: #{tpu_custom_call.1} parent=43 // pred_check_branch
          %697 = sbr.rel (%p695) target = $region48
        $region47: #{tpu_custom_call.1} parent=43 // pred_region
          %s698 = sand.u32 %s91, 1
          %s699 = scalar_lea.sflag [#allocation3], %s698
          %s700 = sand.u32 %s91, 1
          %s701 = smul.addr %s700, 8
          %s702 = scalar_lea.vmem [#allocation2], %s701
          %703 = dma.done %s699, 128
        $region48: #{tpu_custom_call.1} parent=43 // pred_fallthru
          _
        // Predicated region
        $region49: #{tpu_custom_call.1} parent=43 // pred_check
          %p704 = pneg %p132
        $region50: #{tpu_custom_call.1} parent=43 // pred_check_branch
          %706 = sbr.rel (%p704) target = $region52
        $region51: #{tpu_custom_call.1} parent=43 // pred_region
          %s707 = sand.u32 %s117, 1
          %s708 = scalar_lea.sflag [#allocation5], %s707
          %s709 = sand.u32 %s117, 1
          %s710 = smul.addr %s709, 8
          %s711 = scalar_lea.vmem [#allocation4], %s710
          %712 = dma.done %s708, 128
        $region52: #{tpu_custom_call.1} parent=43 // pred_fallthru
          _
      $region44: #{tpu_custom_call.1} parent=5 // pred_fallthru
        _
    $region6: #{tpu_custom_call.1} parent=1 // loop_footer
      %s20 = sadd.s32 1, %s16
    $region7: #{tpu_custom_call.1} parent=1 // loop_footer_branch
      %15 = sbr.rel target = $region3
    $region8: #{tpu_custom_call.1} parent=1 // loop_exit
      _
    %713 = vsyncpa [#allocation3], 1
    %s714 = scalar_lea.sflag [#allocation3], 1
    %715 = vsyncpa %s714, 1
    %716 = vsyncpa [#allocation5], 1
    %s717 = scalar_lea.sflag [#allocation5], 1
    %718 = vsyncpa %s717, 1

</llo_original>
